<compile_context>
chip_gen: v5e
topology: v5e:2x2
jax: 0.10.0
libtpu: 0.0.40
codegen_flags: <defaults>
</compile_context>

<pallas_src>
import functools

import jax
import jax.numpy as jnp
from jax.experimental import pallas as pl
from jax.experimental.pallas import tpu as pltpu


def _round_up(x, m):
    return (x + m - 1) // m * m


def _largest_lane_divisor(n, cap):
    """Largest multiple-of-128 divisor of n (n % 128 == 0) that is <= cap."""
    cap = max(128, min(int(cap), n))
    best = 128
    d = 128
    while d <= cap:
        if n % d == 0:
            best = d
        d += 128
    return best


def _vmem_capacity_bytes():
    try:
        info = pltpu.get_tpu_info()
        cap = getattr(info, "vmem_capacity_bytes", None)
        if cap:
            return int(cap)
    except Exception:
        pass
    return 128 * 1024 * 1024   # conservative fallback (v5e/v6e)


# ---------------------------------------------------------------------------
# Kernels
# ---------------------------------------------------------------------------

def ffn_kernel_resident(x_ref, w1_ref, b1_ref, w2_ref, b2_ref, o_ref,
                        *, chunk, n_chunks):
    # Weights fully resident in VMEM.  d_ff is chunked inside the body so the
    # VPU epilogue (bias+ReLU+cast) of chunk j overlaps the MXU work of j+1.
    x = x_ref[...].astype(w1_ref.dtype)            # per-tile cast, no HBM pass
    if n_chunks == 1:
        h = jnp.dot(x, w1_ref[...], preferred_element_type=jnp.float32)
        h = jnp.maximum(h + b1_ref[...], 0.0)      # bias + ReLU in f32 (VPU)
        y = jnp.dot(h.astype(w2_ref.dtype), w2_ref[...],
                    preferred_element_type=jnp.float32)
        o_ref[...] = (y + b2_ref[...]).astype(o_ref.dtype)
    else:
        def body(j, acc):
            off = pl.multiple_of(j * chunk, 128)
            hj = jnp.dot(x, w1_ref[:, pl.ds(off, chunk)],
                         preferred_element_type=jnp.float32)
            hj = jnp.maximum(hj + b1_ref[:, pl.ds(off, chunk)], 0.0)
            return acc + jnp.dot(hj.astype(w2_ref.dtype),
                                 w2_ref[pl.ds(off, chunk), :],
                                 preferred_element_type=jnp.float32)
        acc0 = jnp.zeros((x_ref.shape[0], w2_ref.shape[1]), jnp.float32)
        acc = jax.lax.fori_loop(0, n_chunks, body, acc0, unroll=True)
        o_ref[...] = (acc + b2_ref[...]).astype(o_ref.dtype)


def ffn_kernel_ktiled(x_ref, w1_ref, b1_ref, w2_ref, b2_ref, o_ref, acc_ref):
    # d_ff streamed in slabs along grid axis 1; f32 accumulator in VMEM scratch.
    # Per-slab ReLU is exact because ReLU is elementwise over d_ff.
    k = pl.program_id(1)

    @pl.when(k == 0)
    def _():
        acc_ref[...] = jnp.zeros_like(acc_ref)

    x = x_ref[...].astype(w1_ref.dtype)
    h = jnp.dot(x, w1_ref[...], preferred_element_type=jnp.float32)
    h = jnp.maximum(h + b1_ref[...], 0.0)
    acc_ref[...] += jnp.dot(h.astype(w2_ref.dtype), w2_ref[...],
                            preferred_element_type=jnp.float32)

    @pl.when(k == pl.num_programs(1) - 1)
    def _():
        o_ref[...] = (acc_ref[...] + b2_ref[...]).astype(o_ref.dtype)


# ---------------------------------------------------------------------------
# Wrappers
# ---------------------------------------------------------------------------

def prepare_ffn_params(w1, b1, w2, b2, *, compute_dtype=jnp.bfloat16):
    """Transpose torch-style (out,in) weights, pad feature dims to multiples
    of 128, and cast to the MXU dtype -- once, outside the jitted forward."""
    d_ff, d_model = w1.shape
    d_model_p = _round_up(d_model, 128)
    d_ff_p = _round_up(d_ff, 128)

    w1_t = jnp.zeros((d_model_p, d_ff_p), compute_dtype)
    w1_t = w1_t.at[:d_model, :d_ff].set(jnp.transpose(w1).astype(compute_dtype))
    w2_t = jnp.zeros((d_ff_p, d_model_p), compute_dtype)
    w2_t = w2_t.at[:d_ff, :d_model].set(jnp.transpose(w2).astype(compute_dtype))
    b1_p = jnp.zeros((1, d_ff_p), jnp.float32).at[0, :d_ff].set(b1.astype(jnp.float32))
    b2_p = jnp.zeros((1, d_model_p), jnp.float32).at[0, :d_model].set(b2.astype(jnp.float32))
    return w1_t, b1_p, w2_t, b2_p


@functools.partial(jax.jit, static_argnames=("tile_m", "tile_k"))
def feed_forward(x, w1_t, b1, w2_t, b2, *, tile_m=None, tile_k=None):
    """x: (B, S, d_model); w1_t/b1/w2_t/b2 from prepare_ffn_params."""
    B, S, d_model = x.shape
    d_model_p, d_ff_p = w1_t.shape
    compute_dtype = w1_t.dtype
    out_dtype = x.dtype
    cbytes = jnp.dtype(compute_dtype).itemsize
    xbytes = jnp.dtype(x.dtype).itemsize
    obytes = jnp.dtype(out_dtype).itemsize

    # ----- generation-aware VMEM budget -----------------------------------
    vmem_cap = _vmem_capacity_bytes()              # 128 MiB v5e/v6e, 64 MiB v7x
    resident_budget = (vmem_cap * 3) // 4          # ~96 MiB / ~48 MiB
    vmem_limit_cap = (vmem_cap * 7) // 8           # ~112 MiB / ~56 MiB headroom

    M = B * S
    sub = 8 if xbytes >= 4 else 16                 # sublane multiple of x dtype

    weight_bytes = (w1_t.size + w2_t.size) * cbytes
    bias_bytes = (b1.size + b2.size) * 4

    # In-body d_ff chunk for the resident kernel (epilogue/MXU overlap).
    if d_ff_p <= 1024:
        chunk = d_ff_p
    else:
        chunk = _largest_lane_divisor(d_ff_p, 512)
    n_chunks = d_ff_p // chunk

    def resident_vmem(tm):
        h = tm * chunk * 4 + (tm * d_model_p * 4 if n_chunks > 1 else 0)
        return (weight_bytes + bias_bytes + h
                + 2 * tm * d_model_p * (xbytes + obytes))

    def ktiled_vmem(tm, tkk, nbuf):
        return (nbuf * 2 * d_model_p * tkk * cbytes      # w1/w2 slabs
                + nbuf * tkk * 4 + 2 * d_model_p * 4     # bias slabs
                + tm * d_model_p * 4                     # f32 accumulator
                + tm * tkk * 4                           # f32 h slab
                + 2 * tm * d_model_p * (xbytes + obytes))

    # ----- residency decision + tile_m ------------------------------------
    tm_res = 256 if tile_m is None else int(tile_m)
    tm_res = _round_up(max(sub, min(tm_res, _round_up(M, sub))), sub)

    if tile_k is not None:
        tk = _largest_lane_divisor(d_ff_p, int(tile_k))
        ktiled = tk < d_ff_p
    else:
        ktiled = resident_vmem(tm_res) > resident_budget
        tk = _largest_lane_divisor(d_ff_p, 512) if ktiled else d_ff_p

    if not ktiled:
        tile_m_eff = tm_res
        kernel = functools.partial(ffn_kernel_resident, chunk=chunk,
                                   n_chunks=n_chunks)
        scratch = []
        dims = ("parallel",)
    else:
        if tile_m is None:
            # High enough arithmetic intensity to beat weight-slab streaming.
            tm_kt = 1024 if vmem_cap >= 96 * 1024 * 1024 else 512
        else:
            tm_kt = int(tile_m)
        tm_kt = _round_up(max(sub, min(tm_kt, _round_up(M, sub))), sub)
        while tm_kt > 256 and ktiled_vmem(tm_kt, tk, 2) > resident_budget:
            tm_kt = _round_up(tm_kt // 2, sub)
        tile_m_eff = tm_kt
        kernel = ffn_kernel_ktiled
        scratch = [pltpu.VMEM((tile_m_eff, d_model_p), jnp.float32)]
        dims = ("parallel", "arbitrary")

    M_p = _round_up(M, tile_m_eff)
    m_tiles = M_p // tile_m_eff
    # Keep >=2 M tiles when possible so v7x's two TensorCores are both fed.
    if m_tiles == 1 and tile_m_eff >= 512:
        tile_m_eff = _round_up(tile_m_eff // 2, sub)
        M_p = _round_up(M, tile_m_eff)
        m_tiles = M_p // tile_m_eff

    # ----- activations: no wrapper-side cast; pad only when needed --------
    x2d = x.reshape(M, d_model)
    need_pad = (M_p != M) or (d_model_p != d_model)
    if need_pad:
        x2d = jnp.pad(x2d, ((0, M_p - M), (0, d_model_p - d_model)))

    # ----- cost estimate (include weight re-streaming on the ktiled path) --
    flops = 4 * M_p * d_model_p * d_ff_p
    w_traffic = weight_bytes * (m_tiles if ktiled else 1)
    bytes_accessed = (M_p * d_model_p * xbytes + w_traffic + bias_bytes
                      + M_p * d_model_p * obytes)
    cost = pl.CostEstimate(flops=flops, transcendentals=0,
                           bytes_accessed=bytes_accessed)

    resident1 = pl.Buffered(1)   # constant-index blocks: no second buffer
    if not ktiled:
        grid = (m_tiles,)
        in_specs = [
            pl.BlockSpec((tile_m_eff, d_model_p), lambda i: (i, 0)),
            pl.BlockSpec((d_model_p, d_ff_p), lambda i: (0, 0), pipeline_mode=resident1),
            pl.BlockSpec((1, d_ff_p), lambda i: (0, 0), pipeline_mode=resident1),
            pl.BlockSpec((d_ff_p, d_model_p), lambda i: (0, 0), pipeline_mode=resident1),
            pl.BlockSpec((1, d_model_p), lambda i: (0, 0), pipeline_mode=resident1),
        ]
        out_specs = pl.BlockSpec((tile_m_eff, d_model_p), lambda i: (i, 0))
        vmem_est = resident_vmem(tile_m_eff)
    else:
        nbuf = 3 if tile_m_eff < 512 else 2          # hide slab DMA at small M
        wbuf = pl.Buffered(nbuf)
        grid = (m_tiles, d_ff_p // tk)
        in_specs = [
            pl.BlockSpec((tile_m_eff, d_model_p), lambda i, k: (i, 0)),
            pl.BlockSpec((d_model_p, tk), lambda i, k: (0, k), pipeline_mode=wbuf),
            pl.BlockSpec((1, tk), lambda i, k: (0, k), pipeline_mode=wbuf),
            pl.BlockSpec((tk, d_model_p), lambda i, k: (k, 0), pipeline_mode=wbuf),
            pl.BlockSpec((1, d_model_p), lambda i, k: (0, 0), pipeline_mode=resident1),
        ]
        out_specs = pl.BlockSpec((tile_m_eff, d_model_p), lambda i, k: (i, 0))
        vmem_est = ktiled_vmem(tile_m_eff, tk, nbuf)

    vmem_limit = int(min(vmem_limit_cap, max(2 * vmem_est, 32 * 1024 * 1024)))
    vmem_limit = int(max(vmem_limit, min(vmem_limit_cap, vmem_est + (4 << 20))))

    out2d = pl.pallas_call(
        kernel,
        out_shape=jax.ShapeDtypeStruct((M_p, d_model_p), out_dtype),
        grid_spec=pltpu.PrefetchScalarGridSpec(
            num_scalar_prefetch=0,
            grid=grid,
            in_specs=in_specs,
            out_specs=out_specs,
            scratch_shapes=scratch,
        ),
        compiler_params=pltpu.CompilerParams(
            dimension_semantics=dims,
            vmem_limit_bytes=vmem_limit,
        ),
        cost_estimate=cost,
    )(x2d, w1_t, b1, w2_t, b2)

    if need_pad:
        out2d = out2d[:M, :d_model]
    return out2d.reshape(B, S, d_model)


def feed_forward_ref(x, w1, b1, w2, b2, compute_dtype=None):
    """Pure-JAX reference with PyTorch Linear semantics.  If compute_dtype is
    given, mirror the kernel's cast-to-bf16 / accumulate-in-f32 behaviour."""
    if compute_dtype is None:
        h = jnp.maximum(jnp.einsum("bsd,fd->bsf", x, w1) + b1, 0.0)
        return jnp.einsum("bsf,df->bsd", h, w2) + b2
    xc = x.astype(compute_dtype)
    h = jnp.einsum("bsd,fd->bsf", xc, w1.astype(compute_dtype),
                   preferred_element_type=jnp.float32) + b1
    h = jnp.maximum(h, 0.0)
    y = jnp.einsum("bsf,df->bsd", h.astype(compute_dtype), w2.astype(compute_dtype),
                   preferred_element_type=jnp.float32) + b2
    return y.astype(x.dtype)


if __name__ == "__main__":
    key = jax.random.PRNGKey(0)

    def make_inputs(k, B, S, d_model, d_ff):
        kx, kw1, kb1, kw2, kb2 = jax.random.split(k, 5)
        x = jax.random.normal(kx, (B, S, d_model), dtype=jnp.float32)
        # torch nn.Linear weight shapes: (out_features, in_features)
        w1 = jax.random.normal(kw1, (d_ff, d_model), dtype=jnp.float32) * 0.1
        b1 = jax.random.normal(kb1, (d_ff,), dtype=jnp.float32) * 0.1
        w2 = jax.random.normal(kw2, (d_model, d_ff), dtype=jnp.float32) * 0.1
        b2 = jax.random.normal(kb2, (d_model,), dtype=jnp.float32) * 0.1
        return x, w1, b1, w2, b2

    k1, k2, k3 = jax.random.split(key, 3)

    # Path A: weights resident, padded features (d_model=32 -> 128 lanes).
    B, S, d_model, d_ff = 2, 8, 32, 64
    x, w1, b1, w2, b2 = make_inputs(k1, B, S, d_model, d_ff)
    w1_t, b1_p, w2_t, b2_p = prepare_ffn_params(w1, b1, w2, b2)
    out = jax.block_until_ready(feed_forward(x, w1_t, b1_p, w2_t, b2_p))
    ref = feed_forward_ref(x, w1, b1, w2, b2, compute_dtype=jnp.bfloat16)
    assert out.shape == (B, S, d_model)
    assert jnp.allclose(out, ref, atol=2e-2, rtol=2e-2), "resident path mismatch"

    # Path B: forced d_ff-tiled accumulator path (large-d_ff / v7x fallback),
    # exercising init/accumulate/finalize, weight slabs and M/feature padding.
    B, S, d_model, d_ff = 2, 16, 48, 192
    x, w1, b1, w2, b2 = make_inputs(k2, B, S, d_model, d_ff)
    w1_t, b1_p, w2_t, b2_p = prepare_ffn_params(w1, b1, w2, b2)
    out = jax.block_until_ready(
        feed_forward(x, w1_t, b1_p, w2_t, b2_p, tile_m=16, tile_k=128))
    ref = feed_forward_ref(x, w1, b1, w2, b2, compute_dtype=jnp.bfloat16)
    assert out.shape == (B, S, d_model)
    assert jnp.allclose(out, ref, atol=2e-2, rtol=2e-2), "k-tiled path mismatch"

    # Path C: lane-aligned fast path (d_model % 128 == 0, no pad / no slice).
    B, S, d_model, d_ff = 2, 8, 128, 256
    x, w1, b1, w2, b2 = make_inputs(k3, B, S, d_model, d_ff)
    w1_t, b1_p, w2_t, b2_p = prepare_ffn_params(w1, b1, w2, b2)
    out = jax.block_until_ready(feed_forward(x, w1_t, b1_p, w2_t, b2_p))
    ref = feed_forward_ref(x, w1, b1, w2, b2, compute_dtype=jnp.bfloat16)
    assert out.shape == (B, S, d_model)
    assert jnp.allclose(out, ref, atol=2e-2, rtol=2e-2), "aligned path mismatch"

    print("KERNEL_OK")
</pallas_src>

<mosaic_0001>
module attributes {stable_mosaic.version = 11 : i64} {
  func.func @ffn_kernel_resident(%arg0: i32, %arg1: memref<16x128xf32, #tpu.memory_space<vmem>>, %arg2: memref<128x128xbf16, #tpu.memory_space<vmem>>, %arg3: memref<1x128xf32, #tpu.memory_space<vmem>>, %arg4: memref<128x128xbf16, #tpu.memory_space<vmem>>, %arg5: memref<1x128xf32, #tpu.memory_space<vmem>>, %arg6: memref<16x128xf32, #tpu.memory_space<vmem>>) attributes {dimension_semantics = [#tpu.dimension_semantics<parallel>], iteration_bounds = array<i64: 1>, scalar_prefetch = 0 : i64, scratch_operands = 0 : i64, tpu.core_type = #tpu.core_type<tc>, window_params = [{transform_indices = @transform_0, window_bounds = array<i64: 16, 128>}, {pipeline_mode = #tpu.pipeline_mode<synchronous>, transform_indices = @transform_1, window_bounds = array<i64: 128, 128>}, {pipeline_mode = #tpu.pipeline_mode<synchronous>, transform_indices = @transform_2, window_bounds = array<i64: 1, 128>}, {pipeline_mode = #tpu.pipeline_mode<synchronous>, transform_indices = @transform_3, window_bounds = array<i64: 128, 128>}, {pipeline_mode = #tpu.pipeline_mode<synchronous>, transform_indices = @transform_4, window_bounds = array<i64: 1, 128>}, {transform_indices = @transform_5, window_bounds = array<i64: 16, 128>}]} {
    %c0 = arith.constant 0 : index
    %c0_0 = arith.constant 0 : index
    %0 = vector.load %arg1[%c0, %c0_0] : memref<16x128xf32, #tpu.memory_space<vmem>>, vector<16x128xf32>
    %1 = arith.truncf %0 : vector<16x128xf32> to vector<16x128xbf16>
    %c0_1 = arith.constant 0 : index
    %c0_2 = arith.constant 0 : index
    %2 = vector.load %arg2[%c0_1, %c0_2] : memref<128x128xbf16, #tpu.memory_space<vmem>>, vector<128x128xbf16>
    %cst = arith.constant dense<0.000000e+00> : vector<16x128xf32>
    %3 = tpu.matmul %1, %2, %cst {dimension_numbers = #tpu.dot_dimension_numbers<[1], [0], [0], [1], [0, 0, 1, 1], [], []>} : vector<16x128xbf16>, vector<128x128xbf16>, vector<16x128xf32> -> vector<16x128xf32>
    %c0_3 = arith.constant 0 : index
    %c0_4 = arith.constant 0 : index
    %4 = vector.load %arg3[%c0_3, %c0_4] : memref<1x128xf32, #tpu.memory_space<vmem>>, vector<1x128xf32>
    %5 = vector.broadcast %4 : vector<1x128xf32> to vector<16x128xf32>
    %6 = arith.addf %3, %5 : vector<16x128xf32>
    %cst_5 = arith.constant 0.000000e+00 : f32
    %7 = vector.broadcast %cst_5 : f32 to vector<16x128xf32>
    %8 = arith.maximumf %6, %7 : vector<16x128xf32>
    %9 = arith.truncf %8 : vector<16x128xf32> to vector<16x128xbf16>
    %c0_6 = arith.constant 0 : index
    %c0_7 = arith.constant 0 : index
    %10 = vector.load %arg4[%c0_6, %c0_7] : memref<128x128xbf16, #tpu.memory_space<vmem>>, vector<128x128xbf16>
    %cst_8 = arith.constant dense<0.000000e+00> : vector<16x128xf32>
    %11 = tpu.matmul %9, %10, %cst_8 {dimension_numbers = #tpu.dot_dimension_numbers<[1], [0], [0], [1], [0, 0, 1, 1], [], []>} : vector<16x128xbf16>, vector<128x128xbf16>, vector<16x128xf32> -> vector<16x128xf32>
    %c0_9 = arith.constant 0 : index
    %c0_10 = arith.constant 0 : index
    %12 = vector.load %arg5[%c0_9, %c0_10] : memref<1x128xf32, #tpu.memory_space<vmem>>, vector<1x128xf32>
    %13 = vector.broadcast %12 : vector<1x128xf32> to vector<16x128xf32>
    %14 = arith.addf %11, %13 : vector<16x128xf32>
    %c0_11 = arith.constant 0 : index
    %c0_12 = arith.constant 0 : index
    %15 = vector.load %arg6[%c0_11, %c0_12] : memref<16x128xf32, #tpu.memory_space<vmem>>, vector<16x128xf32>
    tpu.vector_store %arg6[%c0_11, %c0_12], %14 {strides = array<i32>} : memref<16x128xf32, #tpu.memory_space<vmem>>, vector<16x128xf32>,
    return
  }
  func.func @transform_0(%arg0: i32) -> (i32, i32) {
    %c0_i32 = arith.constant 0 : i32
    %c0_i32_0 = arith.constant 0 : i32
    return %arg0, %c0_i32 : i32, i32
  }
  func.func @transform_1(%arg0: i32) -> (i32, i32) {
    %c0_i32 = arith.constant 0 : i32
    %c0_i32_0 = arith.constant 0 : i32
    %c0_i32_1 = arith.constant 0 : i32
    return %c0_i32, %c0_i32_0 : i32, i32
  }
  func.func @transform_2(%arg0: i32) -> (i32, i32) {
    %c0_i32 = arith.constant 0 : i32
    %c0_i32_0 = arith.constant 0 : i32
    %c0_i32_1 = arith.constant 0 : i32
    return %c0_i32, %c0_i32_0 : i32, i32
  }
  func.func @transform_3(%arg0: i32) -> (i32, i32) {
    %c0_i32 = arith.constant 0 : i32
    %c0_i32_0 = arith.constant 0 : i32
    %c0_i32_1 = arith.constant 0 : i32
    return %c0_i32, %c0_i32_0 : i32, i32
  }
  func.func @transform_4(%arg0: i32) -> (i32, i32) {
    %c0_i32 = arith.constant 0 : i32
    %c0_i32_0 = arith.constant 0 : i32
    %c0_i32_1 = arith.constant 0 : i32
    return %c0_i32, %c0_i32_0 : i32, i32
  }
  func.func @transform_5(%arg0: i32) -> (i32, i32) {
    %c0_i32 = arith.constant 0 : i32
    %c0_i32_0 = arith.constant 0 : i32
    return %arg0, %c0_i32 : i32, i32
  }
}

</mosaic_0001>

<llo_original>
// kernel: feed_forward.1
$region0: #{feed_forward.1}
  #allocation0 [shape = 'u32[]', space=smem, size = 0x4, offset = 0x4, fixed_abs, tag = 'smem constant byte address 0x4 - core index']
  #allocation1 [shape = 'u32[72,128]{1,0:T(1,128)}', space=vmem, size = 0x9000, scoped, tag = 'internal scratch']
  %s0 = inlined_call_operand.vmem [shape: f32[16,128], index: 0, kind: input, shape index: {}]
  %s1 = inlined_call_operand.hbm [shape: bf16[128,128], index: 1, kind: input, shape index: {}]
  %s2 = inlined_call_operand.vmem [shape: f32[1,128], index: 2, kind: input, shape index: {}]
  %s3 = inlined_call_operand.hbm [shape: bf16[128,128], index: 3, kind: input, shape index: {}]
  %s4 = inlined_call_operand.vmem [shape: f32[1,128], index: 4, kind: input, shape index: {}]
  %s5 = inlined_call_operand.vmem [shape: f32[16,128], index: 5, kind: output, shape index: {}]
  %s6 = sld [smem:[#allocation0]]
  $region38: #{feed_forward.1} parent=0
    _
  %s8 = ssub.s32 1, %s6
  %s9 = scalar_select 0, %s8, %s6
  $region1: #{feed_forward.1} parent=0
    #allocation2 [shape = 'u8[32768]{0}', space=vmem, size = 0x8000, scoped, tag = 'input window, operand 1, single buffered']
    #allocation3 [shape = 's32[1]{0}', space=sflag, size = 0x4, scoped, tag = 'scoped memory for feed_forward.1']
    #allocation4 [shape = 'u8[32768]{0}', space=vmem, size = 0x8000, scoped, tag = 'input window, operand 3, single buffered']
    #allocation5 [shape = 's32[1]{0}', space=sflag, size = 0x4, scoped, tag = 'scoped memory for feed_forward.1']
    %10 = vsyncpa [#allocation3], 0
    %11 = vsyncpa [#allocation5], 0
    // Predicated region
    $region2: #{feed_forward.1} parent=1 // pred_check
      _
    $region3: #{feed_forward.1} parent=1 // pred_check_branch
      %13 = sbr.rel (0) target = $region5
    $region4: #{feed_forward.1} parent=1 // pred_region
      _
    $region5: #{feed_forward.1} parent=1 // pred_fallthru
      _
    // Predicated region
    $region6: #{feed_forward.1} parent=1 // pred_check
      _
    $region7: #{feed_forward.1} parent=1 // pred_check_branch
      %15 = sbr.rel (0) target = $region9
    $region8: #{feed_forward.1} parent=1 // pred_region
      %17 = vsyncadd [#allocation3], 0
      %s18 = sshll.u32 %s1, 4
      %s19 = int_to_ptr.hbm [resolvable:$true] %s18
      %s20 = sshll.u32 [#allocation2], 4
      %s21 = int_to_ptr.vmem [resolvable:$true] %s20
      %26 = dma.hbm_to_vmem [thread:$0]  %s19, 1024, %s21, [#allocation3], 64, 64, 4
    $region9: #{feed_forward.1} parent=1 // pred_fallthru
      _
    // Predicated region
    $region10: #{feed_forward.1} parent=1 // pred_check
      _
    $region11: #{feed_forward.1} parent=1 // pred_check_branch
      %28 = sbr.rel (0) target = $region13
    $region12: #{feed_forward.1} parent=1 // pred_region
      _
    $region13: #{feed_forward.1} parent=1 // pred_fallthru
      _
    // Predicated region
    $region14: #{feed_forward.1} parent=1 // pred_check
      _
    $region15: #{feed_forward.1} parent=1 // pred_check_branch
      %30 = sbr.rel (0) target = $region17
    $region16: #{feed_forward.1} parent=1 // pred_region
      %32 = vsyncadd [#allocation5], 0
      %s33 = sshll.u32 %s3, 4
      %s34 = int_to_ptr.hbm [resolvable:$true] %s33
      %s35 = sshll.u32 [#allocation4], 4
      %s36 = int_to_ptr.vmem [resolvable:$true] %s35
      %41 = dma.hbm_to_vmem [thread:$0]  %s34, 1024, %s36, [#allocation5], 64, 64, 4
    $region17: #{feed_forward.1} parent=1 // pred_fallthru
      _
    // Predicated region
    $region18: #{feed_forward.1} parent=1 // pred_check
      _
    $region19: #{feed_forward.1} parent=1 // pred_check_branch
      %43 = sbr.rel (0) target = $region21
    $region20: #{feed_forward.1} parent=1 // pred_region
      _
    $region21: #{feed_forward.1} parent=1 // pred_fallthru
      _
    // Predicated region
    $region22: #{feed_forward.1} parent=1 // pred_check
      _
    $region23: #{feed_forward.1} parent=1 // pred_check_branch
      %45 = sbr.rel (0) target = $region25
    $region24: #{feed_forward.1} parent=1 // pred_region
      %47 = dma.done [#allocation3], 1024
    $region25: #{feed_forward.1} parent=1 // pred_fallthru
      _
    // Predicated region
    $region26: #{feed_forward.1} parent=1 // pred_check
      _
    $region27: #{feed_forward.1} parent=1 // pred_check_branch
      %49 = sbr.rel (0) target = $region29
    $region28: #{feed_forward.1} parent=1 // pred_region
      %51 = dma.done [#allocation5], 1024
    $region29: #{feed_forward.1} parent=1 // pred_fallthru
      _
    %v52 = vld [vmem:[%s0] sm:$0xff]
    %v53 = vld [vmem:[%s0 + $0x8] sm:$0xff]
    %v54 = vpack.c.bf16 %v53, %v52
    %v55 = vld [vmem:[#allocation2] sm:$0xf]
    %v56 = vld [vmem:[#allocation2 + $0x4] sm:$0xf]
    %v57 = vld [vmem:[#allocation2 + $0x8] sm:$0xf]
    %v58 = vld [vmem:[#allocation2 + $0xc] sm:$0xf]
    %v59 = vld [vmem:[#allocation2 + $0x10] sm:$0xf]
    %v60 = vld [vmem:[#allocation2 + $0x14] sm:$0xf]
    %v61 = vld [vmem:[#allocation2 + $0x18] sm:$0xf]
    %v62 = vld [vmem:[#allocation2 + $0x1c] sm:$0xf]
    %v63 = vld [vmem:[#allocation2 + $0x20] sm:$0xf]
    %v64 = vld [vmem:[#allocation2 + $0x24] sm:$0xf]
    %v65 = vld [vmem:[#allocation2 + $0x28] sm:$0xf]
    %v66 = vld [vmem:[#allocation2 + $0x2c] sm:$0xf]
    %v67 = vld [vmem:[#allocation2 + $0x30] sm:$0xf]
    %v68 = vld [vmem:[#allocation2 + $0x34] sm:$0xf]
    %v69 = vld [vmem:[#allocation2 + $0x38] sm:$0xf]
    %v70 = vld [vmem:[#allocation2 + $0x3c] sm:$0xf]
    %v71 = vld [vmem:[%s2] sm:$0x1]
    %v73 = vperm.slane %v71, 0
    %v91 = vunpack.c.l.b16 %v55
    %v92 = vunpack.c.l.b16 %v56
    %v93 = vunpack.c.l.b16 %v57
    %v94 = vunpack.c.l.b16 %v58
    %v95 = vunpack.c.l.b16 %v59
    %v96 = vunpack.c.l.b16 %v60
    %v97 = vunpack.c.l.b16 %v61
    %v98 = vunpack.c.l.b16 %v62
    %v99 = vunpack.c.l.b16 %v63
    %v100 = vunpack.c.l.b16 %v64
    %v101 = vunpack.c.l.b16 %v65
    %v102 = vunpack.c.l.b16 %v66
    %v103 = vunpack.c.l.b16 %v67
    %v104 = vunpack.c.l.b16 %v68
    %v105 = vunpack.c.l.b16 %v69
    %v106 = vunpack.c.l.b16 %v70
    %v107 = vpack.c.b16 %v92, %v91
    %v108 = vpack.c.b16 %v94, %v93
    %v109 = vpack.c.b16 %v96, %v95
    %v110 = vpack.c.b16 %v98, %v97
    %v111 = vpack.c.b16 %v100, %v99
    %v112 = vpack.c.b16 %v102, %v101
    %v113 = vpack.c.b16 %v104, %v103
    %v114 = vpack.c.b16 %v106, %v105
    %123 = vmatpush.bf16.msra.mxu0 %v114
    %124 = vmatpush.bf16.msra.mxu0 %v113
    %125 = vmatpush.bf16.msra.mxu0 %v112
    %126 = vmatpush.bf16.msra.mxu0 %v111
    %127 = vmatpush.bf16.msra.mxu0 %v110
    %128 = vmatpush.bf16.msra.mxu0 %v109
    %129 = vmatpush.bf16.msra.mxu0 %v108
    %130 = vmatpush.bf16.msra.mxu0 %v107
    %131 = vmatmul.bf16.gmra.mxu0 %v54
    %v132 = vpop.f32.mrf.mxu0
    %v133 = vadd.f32 %v73, %v132
    %v134 = vpop.f32.mrf.mxu0
    %v135 = vadd.f32 %v73, %v134
    %136 = vdwg.mxu0
    %v137 = vmax.f32 %v133, 0.0
    %v138 = vmax.f32 %v135, 0.0
    %v139 = vpack.c.bf16 %v138, %v137
    %v140 = vld [vmem:[#allocation4] sm:$0xf]
    %v141 = vld [vmem:[#allocation4 + $0x4] sm:$0xf]
    %v142 = vld [vmem:[#allocation4 + $0x8] sm:$0xf]
    %v143 = vld [vmem:[#allocation4 + $0xc] sm:$0xf]
    %v144 = vld [vmem:[#allocation4 + $0x10] sm:$0xf]
    %v145 = vld [vmem:[#allocation4 + $0x14] sm:$0xf]
    %v146 = vld [vmem:[#allocation4 + $0x18] sm:$0xf]
    %v147 = vld [vmem:[#allocation4 + $0x1c] sm:$0xf]
    %v148 = vld [vmem:[#allocation4 + $0x20] sm:$0xf]
    %v149 = vld [vmem:[#allocation4 + $0x24] sm:$0xf]
    %v150 = vld [vmem:[#allocation4 + $0x28] sm:$0xf]
    %v151 = vld [vmem:[#allocation4 + $0x2c] sm:$0xf]
    %v152 = vld [vmem:[#allocation4 + $0x30] sm:$0xf]
    %v153 = vld [vmem:[#allocation4 + $0x34] sm:$0xf]
    %v154 = vld [vmem:[#allocation4 + $0x38] sm:$0xf]
    %v155 = vld [vmem:[#allocation4 + $0x3c] sm:$0xf]
    %v156 = vld [vmem:[%s4] sm:$0x1]
    %v158 = vperm.slane %v156, 0
    %v176 = vunpack.c.l.b16 %v140
    %v177 = vunpack.c.l.b16 %v141
    %v178 = vunpack.c.l.b16 %v142
    %v179 = vunpack.c.l.b16 %v143
    %v180 = vunpack.c.l.b16 %v144
    %v181 = vunpack.c.l.b16 %v145
    %v182 = vunpack.c.l.b16 %v146
    %v183 = vunpack.c.l.b16 %v147
    %v184 = vunpack.c.l.b16 %v148
    %v185 = vunpack.c.l.b16 %v149
    %v186 = vunpack.c.l.b16 %v150
    %v187 = vunpack.c.l.b16 %v151
    %v188 = vunpack.c.l.b16 %v152
    %v189 = vunpack.c.l.b16 %v153
    %v190 = vunpack.c.l.b16 %v154
    %v191 = vunpack.c.l.b16 %v155
    %v192 = vpack.c.b16 %v177, %v176
    %v193 = vpack.c.b16 %v179, %v178
    %v194 = vpack.c.b16 %v181, %v180
    %v195 = vpack.c.b16 %v183, %v182
    %v196 = vpack.c.b16 %v185, %v184
    %v197 = vpack.c.b16 %v187, %v186
    %v198 = vpack.c.b16 %v189, %v188
    %v199 = vpack.c.b16 %v191, %v190
    %208 = vmatpush.bf16.msra.mxu0 %v199
    %209 = vmatpush.bf16.msra.mxu0 %v198
    %210 = vmatpush.bf16.msra.mxu0 %v197
    %211 = vmatpush.bf16.msra.mxu0 %v196
    %212 = vmatpush.bf16.msra.mxu0 %v195
    %213 = vmatpush.bf16.msra.mxu0 %v194
    %214 = vmatpush.bf16.msra.mxu0 %v193
    %215 = vmatpush.bf16.msra.mxu0 %v192
    %216 = vmatmul.bf16.gmra.mxu0 %v139
    %v217 = vpop.f32.mrf.mxu0
    %v218 = vadd.f32 %v158, %v217
    %v219 = vpop.f32.mrf.mxu0
    %v220 = vadd.f32 %v158, %v219
    %221 = vdwg.mxu0
    %222 = vst [vmem:[%s5] sm:$0xff] %v218
    %223 = vst [vmem:[%s5 + $0x8] sm:$0xff] %v220
    // Predicated region
    $region30: #{feed_forward.1} parent=1 // pred_check
      _
    $region31: #{feed_forward.1} parent=1 // pred_check_branch
      %225 = sbr.rel (0) target = $region33
    $region32: #{feed_forward.1} parent=1 // pred_region
      _
    $region33: #{feed_forward.1} parent=1 // pred_fallthru
      _
    // Predicated region
    $region34: #{feed_forward.1} parent=1 // pred_check
      _
    $region35: #{feed_forward.1} parent=1 // pred_check_branch
      %227 = sbr.rel (0) target = $region37
    $region36: #{feed_forward.1} parent=1 // pred_region
      _
    $region37: #{feed_forward.1} parent=1 // pred_fallthru
      _
    %228 = vsyncpa [#allocation3], 1
    %229 = vsyncpa [#allocation5], 1

</llo_original>
